<compile_context>
chip_gen: v5e
topology: v5e:2x2
jax: 0.10.0
libtpu: 0.0.40
codegen_flags: <defaults>
</compile_context>

<pallas_src>
import math
import functools

import jax
import jax.numpy as jnp
from jax import lax
from jax.experimental import pallas as pl
from jax.experimental.pallas import tpu as pltpu

# ---- config (small, deterministic) -----------------------------------------
BATCH = 2
SEQ = 8            # T  (<= block_size)
BLOCK_SIZE = 16    # cfg.block_size (max context; mask generated for :T, :T)
N_EMBD = 32        # C
N_HEAD = 4
HEAD_SIZE = N_EMBD // N_HEAD
P_DROP_ATTN = 0.0  # eval-mode dropout (identity)


# ---- Pallas kernel ----------------------------------------------------------
def mha_kernel(x_ref, w_ref, b_ref, o_ref, *, n_head, head_size, mxu_dtype):
    """One grid step = one batch element.

    x_ref: (1, T, C)   input block for this batch element
    w_ref: (C, 3C)     fused QKV projection weight (resident across steps)
    b_ref: (1, 3C)     fused QKV projection bias
    o_ref: (1, T, C)   merged-head output block
    """
    _, T, C = x_ref.shape
    x = x_ref[0]                                            # (T, C)

    # Fused QKV projection: one MXU matmul per batch element, f32 accumulate.
    qkv = jnp.dot(x, w_ref[...], preferred_element_type=jnp.float32)
    qkv = qkv + b_ref[...]                                  # (T, 3C)

    scale = 1.0 / math.sqrt(head_size)
    q_all = qkv[:, 0 * C:1 * C] * scale                     # scale folded into q once
    k_all = qkv[:, 1 * C:2 * C]
    v_all = qkv[:, 2 * C:3 * C]

    # MXU operands in bf16 (f32 accumulation); softmax math stays f32.
    k_mx = k_all.astype(mxu_dtype)

    # Causal mask built in-kernel (no HBM-resident bias array). Finite sentinel;
    # the diagonal is always allowed so no row is fully masked.
    row = lax.broadcasted_iota(jnp.int32, (T, T), 0)
    col = lax.broadcasted_iota(jnp.int32, (T, T), 1)
    causal = col <= row                                     # (T, T) bool
    neg_big = jnp.float32(-1e30)

    # Channel (lane) index, hoisted out of the head loop.
    lane = lax.broadcasted_iota(jnp.int32, (T, C), 1)

    # Contract the last dim of both operands (q @ k^T without an explicit .T).
    dn = (((1,), (1,)), ((), ()))

    merged = jnp.zeros((T, C), jnp.float32)
    for h in range(n_head):                                 # static, small loop
        lo = h * head_size
        band = (lane >= lo) & (lane < lo + head_size)       # head-h channel mask

        # Per-head q via masking: masked channels contribute 0 to the MXU
        # contraction, so this equals q_h @ k_h^T (no narrow lane slices).
        q_h = jnp.where(band, q_all, 0.0).astype(mxu_dtype)
        # Mask v (not the output): identical math, keeps the VPU select off the
        # MXU result path and lets the head outputs sum directly into `merged`.
        v_h = jnp.where(band, v_all, 0.0).astype(mxu_dtype)

        s = lax.dot_general(q_h, k_mx, dn,
                            preferred_element_type=jnp.float32)   # (T, T), f32
        s = jnp.where(causal, s, neg_big)

        # Numerically stable softmax over keys, all f32. Exact reciprocal of the
        # (T, 1) denominator (negligible cost, keeps the check tolerance honest).
        m = jnp.max(s, axis=-1, keepdims=True)
        p = jnp.exp(s - m)
        denom = jnp.sum(p, axis=-1, keepdims=True)
        attn = p * (1.0 / denom)

        # TODO(synk): attention-weight dropout would go here (eval mode -> identity).

        out_h = jnp.dot(attn.astype(mxu_dtype), v_h,
                        preferred_element_type=jnp.float32)       # (T, C), head-h cols
        merged = merged + out_h

    o_ref[0] = merged.astype(o_ref.dtype)                   # single full store


def multi_head_attention(x, w_qkv, b_qkv, *, n_head=N_HEAD,
                         mxu_dtype=jnp.bfloat16):
    """x: (B, T, C) float32 -> (B, T, C) float32."""
    B, T, C = x.shape
    head_size = C // n_head
    b2d = b_qkv.reshape(1, 3 * C)                            # wrapper-side plumbing

    kernel = functools.partial(mha_kernel, n_head=n_head,
                               head_size=head_size, mxu_dtype=mxu_dtype)

    return pl.pallas_call(
        kernel,
        out_shape=jax.ShapeDtypeStruct((B, T, C), jnp.float32),
        grid=(B,),                                           # batch as a grid axis
        in_specs=[
            pl.BlockSpec((1, T, C), lambda b: (b, 0, 0)),    # x (per-batch block)
            pl.BlockSpec((C, 3 * C), lambda b: (0, 0)),      # QKV weight (resident)
            pl.BlockSpec((1, 3 * C), lambda b: (0, 0)),      # QKV bias (resident)
        ],
        out_specs=pl.BlockSpec((1, T, C), lambda b: (b, 0, 0)),
        compiler_params=pltpu.CompilerParams(
            dimension_semantics=("parallel",)),              # 2 TCs on v7x
    )(x, w_qkv, b2d)


# ---- pure-JAX reference for verification ------------------------------------
def reference_forward(x, w_qkv, b_qkv, n_head=N_HEAD):
    B, T, C = x.shape
    hs = C // n_head
    hi = lax.Precision.HIGHEST
    qkv = jnp.einsum('btc,cf->btf', x, w_qkv, precision=hi) + b_qkv
    q, k, v = jnp.split(qkv, 3, axis=-1)

    def split_heads(t):
        return t.reshape(B, T, n_head, hs).transpose(0, 2, 1, 3)

    q, k, v = split_heads(q), split_heads(k), split_heads(v)
    s = jnp.einsum('bhqd,bhkd->bhqk', q, k, precision=hi) / math.sqrt(hs)
    mask = jnp.tril(jnp.ones((T, T), dtype=bool))[None, None]
    s = jnp.where(mask, s, -jnp.inf)
    w = jax.nn.softmax(s, axis=-1)
    out = jnp.einsum('bhqk,bhkd->bhqd', w, v, precision=hi)
    return out.transpose(0, 2, 1, 3).reshape(B, T, C)


# ---- main --------------------------------------------------------------------
if __name__ == "__main__":
    key = jax.random.PRNGKey(0)
    kx, kw, kb = jax.random.split(key, 3)

    x = jax.random.normal(kx, (BATCH, SEQ, N_EMBD), dtype=jnp.float32)

    # Deterministic nn.Linear-style init: U(-1/sqrt(fan_in), 1/sqrt(fan_in)).
    bound = 1.0 / math.sqrt(N_EMBD)
    w_qkv = jax.random.uniform(kw, (N_EMBD, 3 * N_EMBD), jnp.float32,
                               minval=-bound, maxval=bound)
    b_qkv = jax.random.uniform(kb, (3 * N_EMBD,), jnp.float32,
                               minval=-bound, maxval=bound)

    ref = reference_forward(x, w_qkv, b_qkv)

    # 1) f32-operand run: tight tolerance. Catches any masking / head-merge /
    #    projection / scale bug (those would be O(0.1)+), independent of bf16 rounding.
    out_f32 = jax.jit(functools.partial(multi_head_attention,
                                        mxu_dtype=jnp.float32))(x, w_qkv, b_qkv)
    out_f32 = jax.block_until_ready(out_f32)
    assert out_f32.shape == (BATCH, SEQ, N_EMBD)
    err_f32 = float(jnp.max(jnp.abs(out_f32 - ref)))
    assert err_f32 < 2e-3, f"f32-operand path max abs err = {err_f32}"

    # 2) Default bf16-MXU-operand run: tolerance commensurate with bf16 operand
    #    rounding (~2^-9 relative per operand; expected max abs err ~5e-3 here).
    out = jax.jit(multi_head_attention)(x, w_qkv, b_qkv)
    out = jax.block_until_ready(out)
    assert out.shape == (BATCH, SEQ, N_EMBD)
    err_bf16 = float(jnp.max(jnp.abs(out - ref)))
    assert err_bf16 < 2e-2, f"bf16-operand path max abs err = {err_bf16}"

    print("KERNEL_OK")
</pallas_src>

<mosaic_0001>
module attributes {stable_mosaic.version = 11 : i64} {
  func.func @mha_kernel(%arg0: i32, %arg1: memref<1x8x32xf32, #tpu.memory_space<vmem>>, %arg2: memref<32x96xf32, #tpu.memory_space<vmem>>, %arg3: memref<1x96xf32, #tpu.memory_space<vmem>>, %arg4: memref<1x8x32xf32, #tpu.memory_space<vmem>>) attributes {dimension_semantics = [#tpu.dimension_semantics<parallel>], iteration_bounds = array<i64: 2>, scalar_prefetch = 0 : i64, scratch_operands = 0 : i64, tpu.core_type = #tpu.core_type<tc>, window_params = [{transform_indices = @transform_0, window_bounds = array<i64: 1, 8, 32>}, {pipeline_mode = #tpu.pipeline_mode<synchronous>, transform_indices = @transform_1, window_bounds = array<i64: 32, 96>}, {pipeline_mode = #tpu.pipeline_mode<synchronous>, transform_indices = @transform_2, window_bounds = array<i64: 1, 96>}, {transform_indices = @transform_3, window_bounds = array<i64: 1, 8, 32>}]} {
    %c0 = arith.constant 0 : index
    %c0_0 = arith.constant 0 : index
    %c0_1 = arith.constant 0 : index
    %0 = vector.load %arg1[%c0, %c0_0, %c0_1] : memref<1x8x32xf32, #tpu.memory_space<vmem>>, vector<1x8x32xf32>
    %1 = vector.shape_cast %0 : vector<1x8x32xf32> to vector<8x32xf32>
    %c0_2 = arith.constant 0 : index
    %c0_3 = arith.constant 0 : index
    %2 = vector.load %arg2[%c0_2, %c0_3] : memref<32x96xf32, #tpu.memory_space<vmem>>, vector<32x96xf32>
    %cst = arith.constant dense<0.000000e+00> : vector<8x96xf32>
    %3 = tpu.matmul %1, %2, %cst {dimension_numbers = #tpu.dot_dimension_numbers<[1], [0], [0], [1], [0, 0, 1, 1], [], []>} : vector<8x32xf32>, vector<32x96xf32>, vector<8x96xf32> -> vector<8x96xf32>
    %c0_4 = arith.constant 0 : index
    %c0_5 = arith.constant 0 : index
    %4 = vector.load %arg3[%c0_4, %c0_5] : memref<1x96xf32, #tpu.memory_space<vmem>>, vector<1x96xf32>
    %5 = vector.broadcast %4 : vector<1x96xf32> to vector<8x96xf32>
    %6 = arith.addf %3, %5 : vector<8x96xf32>
    %7 = vector.extract_strided_slice %6 {offsets = [0, 0], sizes = [8, 32], strides = [1, 1]} : vector<8x96xf32> to vector<8x32xf32>
    %cst_6 = arith.constant 0.353553385 : f32
    %8 = vector.broadcast %cst_6 : f32 to vector<8x32xf32>
    %9 = arith.mulf %7, %8 : vector<8x32xf32>
    %10 = vector.extract_strided_slice %6 {offsets = [0, 32], sizes = [8, 32], strides = [1, 1]} : vector<8x96xf32> to vector<8x32xf32>
    %11 = vector.extract_strided_slice %6 {offsets = [0, 64], sizes = [8, 32], strides = [1, 1]} : vector<8x96xf32> to vector<8x32xf32>
    %12 = tpu.iota {dimensions = array<i32: 0>} : vector<8x8xi32>
    %13 = tpu.iota {dimensions = array<i32: 1>} : vector<8x8xi32>
    %14 = arith.cmpi sle, %13, %12 : vector<8x8xi32>
    %15 = tpu.iota {dimensions = array<i32: 1>} : vector<8x32xi32>
    %cst_7 = arith.constant 0.000000e+00 : f32
    %16 = vector.broadcast %cst_7 : f32 to vector<8x32xf32>
    %c0_i32 = arith.constant 0 : i32
    %17 = vector.broadcast %c0_i32 : i32 to vector<8x32xi32>
    %18 = arith.cmpi sge, %15, %17 : vector<8x32xi32>
    %c8_i32 = arith.constant 8 : i32
    %19 = vector.broadcast %c8_i32 : i32 to vector<8x32xi32>
    %20 = arith.cmpi slt, %15, %19 : vector<8x32xi32>
    %21 = arith.andi %18, %20 : vector<8x32xi1>
    %cst_8 = arith.constant 0.000000e+00 : f32
    %22 = vector.broadcast %cst_8 : f32 to vector<8x32xf32>
    %23 = arith.select %21, %9, %22 : vector<8x32xi1>, vector<8x32xf32>
    %cst_9 = arith.constant 0.000000e+00 : f32
    %24 = vector.broadcast %cst_9 : f32 to vector<8x32xf32>
    %25 = arith.select %21, %11, %24 : vector<8x32xi1>, vector<8x32xf32>
    %cst_10 = arith.constant dense<0.000000e+00> : vector<8x8xf32>
    %26 = tpu.matmul %23, %10, %cst_10 {dimension_numbers = #tpu.dot_dimension_numbers<[1], [1], [0], [0], [0, 0, 1, 0], [], []>} : vector<8x32xf32>, vector<8x32xf32>, vector<8x8xf32> -> vector<8x8xf32>
    %cst_11 = arith.constant -1.000000e+30 : f32
    %27 = vector.broadcast %cst_11 : f32 to vector<8x8xf32>
    %28 = arith.select %14, %26, %27 : vector<8x8xi1>, vector<8x8xf32>
    %cst_12 = arith.constant dense<0xFF800000> : vector<8xf32>
    %29 = vector.multi_reduction <maximumf>, %28, %cst_12 [1] : vector<8x8xf32> to vector<8xf32>
    %30 = vector.shape_cast %29 : vector<8xf32> to vector<8x1xf32>
    %31 = vector.broadcast %30 : vector<8x1xf32> to vector<8x8xf32>
    %32 = arith.subf %28, %31 : vector<8x8xf32>
    %33 = math.exp %32 : vector<8x8xf32>
    %cst_13 = arith.constant dense<0.000000e+00> : vector<8xf32>
    %34 = vector.multi_reduction <add>, %33, %cst_13 [1] : vector<8x8xf32> to vector<8xf32>
    %35 = vector.shape_cast %34 : vector<8xf32> to vector<8x1xf32>
    %cst_14 = arith.constant 1.000000e+00 : f32
    %36 = vector.broadcast %cst_14 : f32 to vector<8x1xf32>
    %37 = arith.divf %36, %35 : vector<8x1xf32>
    %38 = vector.broadcast %37 : vector<8x1xf32> to vector<8x8xf32>
    %39 = arith.mulf %33, %38 : vector<8x8xf32>
    %cst_15 = arith.constant dense<0.000000e+00> : vector<8x32xf32>
    %40 = tpu.matmul %39, %25, %cst_15 {dimension_numbers = #tpu.dot_dimension_numbers<[1], [0], [0], [1], [0, 0, 1, 1], [], []>} : vector<8x8xf32>, vector<8x32xf32>, vector<8x32xf32> -> vector<8x32xf32>
    %41 = arith.addf %16, %40 : vector<8x32xf32>
    %c8_i32_16 = arith.constant 8 : i32
    %42 = vector.broadcast %c8_i32_16 : i32 to vector<8x32xi32>
    %43 = arith.cmpi sge, %15, %42 : vector<8x32xi32>
    %c16_i32 = arith.constant 16 : i32
    %44 = vector.broadcast %c16_i32 : i32 to vector<8x32xi32>
    %45 = arith.cmpi slt, %15, %44 : vector<8x32xi32>
    %46 = arith.andi %43, %45 : vector<8x32xi1>
    %cst_17 = arith.constant 0.000000e+00 : f32
    %47 = vector.broadcast %cst_17 : f32 to vector<8x32xf32>
    %48 = arith.select %46, %9, %47 : vector<8x32xi1>, vector<8x32xf32>
    %cst_18 = arith.constant 0.000000e+00 : f32
    %49 = vector.broadcast %cst_18 : f32 to vector<8x32xf32>
    %50 = arith.select %46, %11, %49 : vector<8x32xi1>, vector<8x32xf32>
    %cst_19 = arith.constant dense<0.000000e+00> : vector<8x8xf32>
    %51 = tpu.matmul %48, %10, %cst_19 {dimension_numbers = #tpu.dot_dimension_numbers<[1], [1], [0], [0], [0, 0, 1, 0], [], []>} : vector<8x32xf32>, vector<8x32xf32>, vector<8x8xf32> -> vector<8x8xf32>
    %cst_20 = arith.constant -1.000000e+30 : f32
    %52 = vector.broadcast %cst_20 : f32 to vector<8x8xf32>
    %53 = arith.select %14, %51, %52 : vector<8x8xi1>, vector<8x8xf32>
    %cst_21 = arith.constant dense<0xFF800000> : vector<8xf32>
    %54 = vector.multi_reduction <maximumf>, %53, %cst_21 [1] : vector<8x8xf32> to vector<8xf32>
    %55 = vector.shape_cast %54 : vector<8xf32> to vector<8x1xf32>
    %56 = vector.broadcast %55 : vector<8x1xf32> to vector<8x8xf32>
    %57 = arith.subf %53, %56 : vector<8x8xf32>
    %58 = math.exp %57 : vector<8x8xf32>
    %cst_22 = arith.constant dense<0.000000e+00> : vector<8xf32>
    %59 = vector.multi_reduction <add>, %58, %cst_22 [1] : vector<8x8xf32> to vector<8xf32>
    %60 = vector.shape_cast %59 : vector<8xf32> to vector<8x1xf32>
    %cst_23 = arith.constant 1.000000e+00 : f32
    %61 = vector.broadcast %cst_23 : f32 to vector<8x1xf32>
    %62 = arith.divf %61, %60 : vector<8x1xf32>
    %63 = vector.broadcast %62 : vector<8x1xf32> to vector<8x8xf32>
    %64 = arith.mulf %58, %63 : vector<8x8xf32>
    %cst_24 = arith.constant dense<0.000000e+00> : vector<8x32xf32>
    %65 = tpu.matmul %64, %50, %cst_24 {dimension_numbers = #tpu.dot_dimension_numbers<[1], [0], [0], [1], [0, 0, 1, 1], [], []>} : vector<8x8xf32>, vector<8x32xf32>, vector<8x32xf32> -> vector<8x32xf32>
    %66 = arith.addf %41, %65 : vector<8x32xf32>
    %c16_i32_25 = arith.constant 16 : i32
    %67 = vector.broadcast %c16_i32_25 : i32 to vector<8x32xi32>
    %68 = arith.cmpi sge, %15, %67 : vector<8x32xi32>
    %c24_i32 = arith.constant 24 : i32
    %69 = vector.broadcast %c24_i32 : i32 to vector<8x32xi32>
    %70 = arith.cmpi slt, %15, %69 : vector<8x32xi32>
    %71 = arith.andi %68, %70 : vector<8x32xi1>
    %cst_26 = arith.constant 0.000000e+00 : f32
    %72 = vector.broadcast %cst_26 : f32 to vector<8x32xf32>
    %73 = arith.select %71, %9, %72 : vector<8x32xi1>, vector<8x32xf32>
    %cst_27 = arith.constant 0.000000e+00 : f32
    %74 = vector.broadcast %cst_27 : f32 to vector<8x32xf32>
    %75 = arith.select %71, %11, %74 : vector<8x32xi1>, vector<8x32xf32>
    %cst_28 = arith.constant dense<0.000000e+00> : vector<8x8xf32>
    %76 = tpu.matmul %73, %10, %cst_28 {dimension_numbers = #tpu.dot_dimension_numbers<[1], [1], [0], [0], [0, 0, 1, 0], [], []>} : vector<8x32xf32>, vector<8x32xf32>, vector<8x8xf32> -> vector<8x8xf32>
    %cst_29 = arith.constant -1.000000e+30 : f32
    %77 = vector.broadcast %cst_29 : f32 to vector<8x8xf32>
    %78 = arith.select %14, %76, %77 : vector<8x8xi1>, vector<8x8xf32>
    %cst_30 = arith.constant dense<0xFF800000> : vector<8xf32>
    %79 = vector.multi_reduction <maximumf>, %78, %cst_30 [1] : vector<8x8xf32> to vector<8xf32>
    %80 = vector.shape_cast %79 : vector<8xf32> to vector<8x1xf32>
    %81 = vector.broadcast %80 : vector<8x1xf32> to vector<8x8xf32>
    %82 = arith.subf %78, %81 : vector<8x8xf32>
    %83 = math.exp %82 : vector<8x8xf32>
    %cst_31 = arith.constant dense<0.000000e+00> : vector<8xf32>
    %84 = vector.multi_reduction <add>, %83, %cst_31 [1] : vector<8x8xf32> to vector<8xf32>
    %85 = vector.shape_cast %84 : vector<8xf32> to vector<8x1xf32>
    %cst_32 = arith.constant 1.000000e+00 : f32
    %86 = vector.broadcast %cst_32 : f32 to vector<8x1xf32>
    %87 = arith.divf %86, %85 : vector<8x1xf32>
    %88 = vector.broadcast %87 : vector<8x1xf32> to vector<8x8xf32>
    %89 = arith.mulf %83, %88 : vector<8x8xf32>
    %cst_33 = arith.constant dense<0.000000e+00> : vector<8x32xf32>
    %90 = tpu.matmul %89, %75, %cst_33 {dimension_numbers = #tpu.dot_dimension_numbers<[1], [0], [0], [1], [0, 0, 1, 1], [], []>} : vector<8x8xf32>, vector<8x32xf32>, vector<8x32xf32> -> vector<8x32xf32>
    %91 = arith.addf %66, %90 : vector<8x32xf32>
    %c24_i32_34 = arith.constant 24 : i32
    %92 = vector.broadcast %c24_i32_34 : i32 to vector<8x32xi32>
    %93 = arith.cmpi sge, %15, %92 : vector<8x32xi32>
    %c32_i32 = arith.constant 32 : i32
    %94 = vector.broadcast %c32_i32 : i32 to vector<8x32xi32>
    %95 = arith.cmpi slt, %15, %94 : vector<8x32xi32>
    %96 = arith.andi %93, %95 : vector<8x32xi1>
    %cst_35 = arith.constant 0.000000e+00 : f32
    %97 = vector.broadcast %cst_35 : f32 to vector<8x32xf32>
    %98 = arith.select %96, %9, %97 : vector<8x32xi1>, vector<8x32xf32>
    %cst_36 = arith.constant 0.000000e+00 : f32
    %99 = vector.broadcast %cst_36 : f32 to vector<8x32xf32>
    %100 = arith.select %96, %11, %99 : vector<8x32xi1>, vector<8x32xf32>
    %cst_37 = arith.constant dense<0.000000e+00> : vector<8x8xf32>
    %101 = tpu.matmul %98, %10, %cst_37 {dimension_numbers = #tpu.dot_dimension_numbers<[1], [1], [0], [0], [0, 0, 1, 0], [], []>} : vector<8x32xf32>, vector<8x32xf32>, vector<8x8xf32> -> vector<8x8xf32>
    %cst_38 = arith.constant -1.000000e+30 : f32
    %102 = vector.broadcast %cst_38 : f32 to vector<8x8xf32>
    %103 = arith.select %14, %101, %102 : vector<8x8xi1>, vector<8x8xf32>
    %cst_39 = arith.constant dense<0xFF800000> : vector<8xf32>
    %104 = vector.multi_reduction <maximumf>, %103, %cst_39 [1] : vector<8x8xf32> to vector<8xf32>
    %105 = vector.shape_cast %104 : vector<8xf32> to vector<8x1xf32>
    %106 = vector.broadcast %105 : vector<8x1xf32> to vector<8x8xf32>
    %107 = arith.subf %103, %106 : vector<8x8xf32>
    %108 = math.exp %107 : vector<8x8xf32>
    %cst_40 = arith.constant dense<0.000000e+00> : vector<8xf32>
    %109 = vector.multi_reduction <add>, %108, %cst_40 [1] : vector<8x8xf32> to vector<8xf32>
    %110 = vector.shape_cast %109 : vector<8xf32> to vector<8x1xf32>
    %cst_41 = arith.constant 1.000000e+00 : f32
    %111 = vector.broadcast %cst_41 : f32 to vector<8x1xf32>
    %112 = arith.divf %111, %110 : vector<8x1xf32>
    %113 = vector.broadcast %112 : vector<8x1xf32> to vector<8x8xf32>
    %114 = arith.mulf %108, %113 : vector<8x8xf32>
    %cst_42 = arith.constant dense<0.000000e+00> : vector<8x32xf32>
    %115 = tpu.matmul %114, %100, %cst_42 {dimension_numbers = #tpu.dot_dimension_numbers<[1], [0], [0], [1], [0, 0, 1, 1], [], []>} : vector<8x8xf32>, vector<8x32xf32>, vector<8x32xf32> -> vector<8x32xf32>
    %116 = arith.addf %91, %115 : vector<8x32xf32>
    %c0_43 = arith.constant 0 : index
    %c0_44 = arith.constant 0 : index
    %c0_45 = arith.constant 0 : index
    %117 = vector.load %arg4[%c0_43, %c0_44, %c0_45] : memref<1x8x32xf32, #tpu.memory_space<vmem>>, vector<1x8x32xf32>
    %118 = vector.shape_cast %117 : vector<1x8x32xf32> to vector<8x32xf32>
    %119 = vector.shape_cast %116 : vector<8x32xf32> to vector<1x8x32xf32>
    tpu.vector_store %arg4[%c0_43, %c0_44, %c0_45], %119 {strides = array<i32>} : memref<1x8x32xf32, #tpu.memory_space<vmem>>, vector<1x8x32xf32>,
    return
  }
  func.func @transform_0(%arg0: i32) -> (i32, i32, i32) {
    %c0_i32 = arith.constant 0 : i32
    %c0_i32_0 = arith.constant 0 : i32
    %c0_i32_1 = arith.constant 0 : i32
    return %arg0, %c0_i32, %c0_i32_0 : i32, i32, i32
  }
  func.func @transform_1(%arg0: i32) -> (i32, i32) {
    %c0_i32 = arith.constant 0 : i32
    %c0_i32_0 = arith.constant 0 : i32
    %c0_i32_1 = arith.constant 0 : i32
    return %c0_i32, %c0_i32_0 : i32, i32
  }
  func.func @transform_2(%arg0: i32) -> (i32, i32) {
    %c0_i32 = arith.constant 0 : i32
    %c0_i32_0 = arith.constant 0 : i32
    %c0_i32_1 = arith.constant 0 : i32
    return %c0_i32, %c0_i32_0 : i32, i32
  }
  func.func @transform_3(%arg0: i32) -> (i32, i32, i32) {
    %c0_i32 = arith.constant 0 : i32
    %c0_i32_0 = arith.constant 0 : i32
    %c0_i32_1 = arith.constant 0 : i32
    return %arg0, %c0_i32, %c0_i32_0 : i32, i32, i32
  }
}

</mosaic_0001>

<llo_original>
// kernel: multi_head_attention.1
$region0: #{multi_head_attention.1}
  #allocation0 [shape = 'u32[]', space=smem, size = 0x4, offset = 0x4, fixed_abs, tag = 'smem constant byte address 0x4 - core index']
  #allocation1 [shape = 'u32[72,128]{1,0:T(1,128)}', space=vmem, size = 0x9000, scoped, tag = 'internal scratch']
  %s0 = inlined_call_operand.hbm [shape: f32[2,8,32], index: 0, kind: input, shape index: {}]
  %s1 = inlined_call_operand.hbm [shape: f32[32,96], index: 1, kind: input, shape index: {}]
  %s2 = inlined_call_operand.vmem [shape: f32[1,96], index: 2, kind: input, shape index: {}]
  %s3 = inlined_call_operand.hbm [shape: f32[2,8,32], index: 3, kind: output, shape index: {}]
  %s4 = sld [smem:[#allocation0]]
  $region53: #{multi_head_attention.1} parent=0
    _
  %s6 = ssub.s32 1, %s4
  %s7 = scalar_select 0, %s6, %s4
  $region1: #{multi_head_attention.1} parent=0
    #allocation2 [shape = 'u8[8192]{0}', space=vmem, size = 0x2000, scoped, tag = 'input window, operand 0']
    #allocation3 [shape = 's32[2]{0}', space=sflag, size = 0x8, scoped, tag = 'scoped memory for multi_head_attention.1']
    #allocation4 [shape = 's32[2]{0}', space=sflag, size = 0x8, scoped, tag = 'scoped memory for multi_head_attention.1']
    #allocation5 [shape = 'u8[16384]{0}', space=vmem, size = 0x4000, scoped, tag = 'input window, operand 1, single buffered']
    #allocation6 [shape = 's32[1]{0}', space=sflag, size = 0x4, scoped, tag = 'scoped memory for multi_head_attention.1']
    #allocation7 [shape = 'u8[8192]{0}', space=vmem, size = 0x2000, scoped, tag = 'output window, operand 0']
    %8 = vsyncpa [#allocation3], 0
    %s9 = scalar_lea.sflag [#allocation3], 1
    %10 = vsyncpa %s9, 0
    %11 = vsyncpa [#allocation6], 0
    %12 = vsyncpa [#allocation4], 0
    %s13 = scalar_lea.sflag [#allocation4], 1
    %14 = vsyncpa %s13, 0
    loop: start=0, step=1, limit=4
    $region2: #{multi_head_attention.1} parent=1 // loop_pre_header
      _
    $region3: #{multi_head_attention.1} parent=1 // loop_header
      %s16 = sphi 0, %s20
      %p17 = scmp.ge.s32.totalorder %s16, 4
      %s26 = sphi 0, %s28
      %s29 = sphi 0, %s26
      %s30 = sphi 0, %s29
      %s46 = sphi 0, %s30
      %s50 = sphi 0, %s50
      %s52 = sphi 0, %s50
      %s53 = sphi 0, %s52
      %s67 = sphi 0, %s53
      %s71 = sphi 0, %s71
      %s73 = sphi 0, %s71
      %s74 = sphi 0, %s73
      %s88 = sphi 0, %s74
      %s94 = sphi 0, %s96
      %s97 = sphi 0, %s94
      %s98 = sphi 0, %s97
      %s114 = sphi 0, %s98
    $region4: #{multi_head_attention.1} parent=1 // loop_header_branch
      %19 = sbr.rel (%p17) target = $region8
    $region5: #{multi_head_attention.1} parent=1 // loop_body
      %s21 = ssub.s32 %s16, 1
      %s22 = ssub.s32 %s16, 2
      %s23 = sadd.s32 %s16, 1
      %s24 = ssub.s32 %s16, %s23
      %p25 = scmp.eq.s32.totalorder %s24, 0
      %s27 = sadd.s32 %s26, 1
      %s28 = scalar_select %p25, %s26, %s27
      %p31 = pneg %p25
      %p32 = scmp.eq.s32.totalorder %s16, 1
      %p33 = por %p31, %p32
      %p34 = scmp.ne.s32.totalorder %s26, %s29
      %p35 = scmp.eq.s32.totalorder %s16, 0
      %p36 = por %p34, %p35
      %p37 = scmp.ne.s32.totalorder %s26, %s29
      %p38 = scmp.eq.s32.totalorder %s21, 1
      %p39 = por %p37, %p38
      %p40 = scmp.ne.s32.totalorder %s29, %s30
      %p41 = scmp.eq.s32.totalorder %s21, 0
      %p42 = por %p40, %p41
      %p43 = scmp.ne.s32.totalorder %s29, %s30
      %p44 = scmp.eq.s32.totalorder %s22, 1
      %p45 = por %p43, %p44
      %p47 = scmp.ne.s32.totalorder %s30, %s46
      %p48 = scmp.eq.s32.totalorder %s22, 0
      %p49 = por %p47, %p48
      %s51 = sadd.s32 %s50, 1
      %p54 = scmp.eq.s32.totalorder %s16, 1
      %p55 = scmp.ne.s32.totalorder %s50, %s52
      %p56 = scmp.eq.s32.totalorder %s16, 0
      %p57 = por %p55, %p56
      %p58 = scmp.ne.s32.totalorder %s50, %s52
      %p59 = scmp.eq.s32.totalorder %s21, 1
      %p60 = por %p58, %p59
      %p61 = scmp.ne.s32.totalorder %s52, %s53
      %p62 = scmp.eq.s32.totalorder %s21, 0
      %p63 = por %p61, %p62
      %p64 = scmp.ne.s32.totalorder %s52, %s53
      %p65 = scmp.eq.s32.totalorder %s22, 1
      %p66 = por %p64, %p65
      %p68 = scmp.ne.s32.totalorder %s53, %s67
      %p69 = scmp.eq.s32.totalorder %s22, 0
      %p70 = por %p68, %p69
      %s72 = sadd.s32 %s71, 1
      %p75 = scmp.eq.s32.totalorder %s16, 1
      %p76 = scmp.ne.s32.totalorder %s71, %s73
      %p77 = scmp.eq.s32.totalorder %s16, 0
      %p78 = por %p76, %p77
      %p79 = scmp.ne.s32.totalorder %s71, %s73
      %p80 = scmp.eq.s32.totalorder %s21, 1
      %p81 = por %p79, %p80
      %p82 = scmp.ne.s32.totalorder %s73, %s74
      %p83 = scmp.eq.s32.totalorder %s21, 0
      %p84 = por %p82, %p83
      %p85 = scmp.ne.s32.totalorder %s73, %s74
      %p86 = scmp.eq.s32.totalorder %s22, 1
      %p87 = por %p85, %p86
      %p89 = scmp.ne.s32.totalorder %s74, %s88
      %p90 = scmp.eq.s32.totalorder %s22, 0
      %p91 = por %p89, %p90
      %s92 = ssub.s32 %s16, %s23
      %p93 = scmp.eq.s32.totalorder %s92, 0
      %s95 = sadd.s32 %s94, 1
      %s96 = scalar_select %p93, %s94, %s95
      %p99 = pneg %p93
      %p100 = scmp.eq.s32.totalorder %s16, 1
      %p101 = por %p99, %p100
      %p102 = scmp.ne.s32.totalorder %s94, %s97
      %p103 = scmp.eq.s32.totalorder %s16, 0
      %p104 = por %p102, %p103
      %p105 = scmp.ne.s32.totalorder %s94, %s97
      %p106 = scmp.eq.s32.totalorder %s21, 1
      %p107 = por %p105, %p106
      %p108 = scmp.ne.s32.totalorder %s97, %s98
      %p109 = scmp.eq.s32.totalorder %s21, 0
      %p110 = por %p108, %p109
      %p111 = scmp.ne.s32.totalorder %s97, %s98
      %p112 = scmp.eq.s32.totalorder %s22, 1
      %p113 = por %p111, %p112
      %p115 = scmp.ne.s32.totalorder %s98, %s114
      %p116 = scmp.eq.s32.totalorder %s22, 0
      %p117 = por %p115, %p116
      %p118 = scmp.le.s32.totalorder 1, %s16
      %p119 = scmp.lt.s32.totalorder %s16, 3
      %p120 = pnand %p118, %p119
      %p121 = pneg %p120
      // Predicated region
      $region9: #{multi_head_attention.1} parent=5 // pred_check
        _
      $region10: #{multi_head_attention.1} parent=5 // pred_check_branch
        %123 = sbr.rel (%p120) target = $region12
      $region11: #{multi_head_attention.1} parent=5 // pred_region
        %s124 = ssub.s32 %s16, 1
        // Predicated region
        $region13: #{multi_head_attention.1} parent=11 // pred_check
          %p125 = pneg %p63
        $region14: #{multi_head_attention.1} parent=11 // pred_check_branch
          %127 = sbr.rel (%p125) target = $region16
        $region15: #{multi_head_attention.1} parent=11 // pred_region
          %129 = vsyncadd [#allocation6], 0
          %s130 = sshll.u32 %s1, 4
          %s131 = int_to_ptr.hbm [resolvable:$true] %s130
          %s132 = sshll.u32 [#allocation5], 4
          %s133 = int_to_ptr.vmem [resolvable:$true] %s132
          %138 = dma.hbm_to_vmem [thread:$0]  %s131, 512, %s133, [#allocation6], 128, 128, 8
        $region16: #{multi_head_attention.1} parent=11 // pred_fallthru
          _
        // Predicated region
        $region17: #{multi_head_attention.1} parent=11 // pred_check
          %p139 = pneg %p84
        $region18: #{multi_head_attention.1} parent=11 // pred_check_branch
          %141 = sbr.rel (%p139) target = $region20
        $region19: #{multi_head_attention.1} parent=11 // pred_region
          _
        $region20: #{multi_head_attention.1} parent=11 // pred_fallthru
          _
      $region12: #{multi_head_attention.1} parent=5 // pred_fallthru
        _
      %p142 = scmp.lt.s32.totalorder %s16, 2
      // Predicated region
      $region21: #{multi_head_attention.1} parent=5 // pred_check
        %p143 = pneg %p142
      $region22: #{multi_head_attention.1} parent=5 // pred_check_branch
        %145 = sbr.rel (%p143) target = $region24
      $region23: #{multi_head_attention.1} parent=5 // pred_region
        // Predicated region
        $region25: #{multi_head_attention.1} parent=23 // pred_check
          %p146 = pneg %p36
        $region26: #{multi_head_attention.1} parent=23 // pred_check_branch
          %148 = sbr.rel (%p146) target = $region28
        $region27: #{multi_head_attention.1} parent=23 // pred_region
          %s149 = sand.u32 %s26, 1
          %s150 = scalar_lea.sflag [#allocation3], %s149
          %s151 = sand.u32 %s26, 1
          %s152 = smul.addr %s151, 8
          %s153 = scalar_lea.vmem [#allocation2], %s152
          %155 = vsyncadd %s150, 0
          %s156 = smul.addr %s16, 8
          %s157 = scalar_lea.hbm %s0, %s156
          %s159 = sshll.u32 %s157, 4
          %s160 = int_to_ptr.hbm [resolvable:$true] %s159
          %s161 = sshll.u32 %s153, 4
          %s162 = int_to_ptr.vmem [resolvable:$true] %s161
          %164 = dma.hbm_to_vmem [thread:$0]  %s160, 128, %s162, %s150
        $region28: #{multi_head_attention.1} parent=23 // pred_fallthru
          _
      $region24: #{multi_head_attention.1} parent=5 // pred_fallthru
        _
      %p165 = scmp.le.s32.totalorder 1, %s16
      %p166 = scmp.lt.s32.totalorder %s16, 3
      %p167 = pnand %p165, %p166
      %p168 = pneg %p167
      // Predicated region
      $region29: #{multi_head_attention.1} parent=5 // pred_check
        _
      $region30: #{multi_head_attention.1} parent=5 // pred_check_branch
        %170 = sbr.rel (%p167) target = $region32
      $region31: #{multi_head_attention.1} parent=5 // pred_region
        %s171 = ssub.s32 %s16, 1
        %s172 = sand.u32 %s29, 1
        %s173 = scalar_lea.sflag [#allocation3], %s172
        %s174 = sand.u32 %s29, 1
        %s175 = smul.addr %s174, 8
        %s176 = scalar_lea.vmem [#allocation2], %s175
        // Predicated region
        $region33: #{multi_head_attention.1} parent=31 // pred_check
          %p177 = pneg %p42
        $region34: #{multi_head_attention.1} parent=31 // pred_check_branch
          %179 = sbr.rel (%p177) target = $region36
        $region35: #{multi_head_attention.1} parent=31 // pred_region
          %181 = dma.done %s173, 128
        $region36: #{multi_head_attention.1} parent=31 // pred_fallthru
          _
        // Predicated region
        $region37: #{multi_head_attention.1} parent=31 // pred_check
          %p182 = pneg %p63
        $region38: #{multi_head_attention.1} parent=31 // pred_check_branch
          %184 = sbr.rel (%p182) target = $region40
        $region39: #{multi_head_attention.1} parent=31 // pred_region
          %186 = dma.done [#allocation6], 512
        $region40: #{multi_head_attention.1} parent=31 // pred_fallthru
          _
        %s187 = sand.u32 %s29, 1
        %s188 = scalar_lea.sflag [#allocation3], %s187
        %s189 = sand.u32 %s29, 1
        %s190 = smul.addr %s189, 8
        %s191 = scalar_lea.vmem [#allocation2], %s190
        %p192 = pneg %p42
        %p193 = pneg %p39
        %p194 = pneg %p63
        %p195 = pneg %p60
        %p196 = pneg %p84
        %p197 = pneg %p81
        %p198 = pneg %p110
        %p199 = pneg %p107
        %s200 = sand.u32 %s97, 1
        %s201 = scalar_lea.sflag [#allocation4], %s200
        %s202 = sand.u32 %s97, 1
        %s203 = smul.addr %s202, 8
        %s204 = scalar_lea.vmem [#allocation7], %s203
        %v205 = vld [vmem:[%s176] sm:$0xff]
        %v206 = vld [vmem:[#allocation5] sm:$0xff]
        %v207 = vld [vmem:[#allocation5 + $0x8] sm:$0xff]
        %v208 = vld [vmem:[#allocation5 + $0x10] sm:$0xff]
        %v209 = vld [vmem:[#allocation5 + $0x18] sm:$0xff]
        %v210 = vld [vmem:[%s2] sm:$0x1]
        %v212 = vperm.slane %v210, 0
        %vm214 = vcmask 261120
        %v216 = vsel %vm214, %v205, 0
        %218 = vmatpush.msra.mxu0 0.0
        %219 = vmatpush.msra.mxu0 0.0
        %220 = vmatpush.msra.mxu0 0.0
        %221 = vmatpush.msra.mxu0 0.0
        %222 = vmatpush.msra.mxu0 0.0
        %223 = vmatpush.msra.mxu0 0.0
        %224 = vmatpush.msra.mxu0 0.0
        %225 = vmatpush.msra.mxu0 0.0
        %226 = vmatpush.msra.mxu0 0.0
        %227 = vmatpush.msra.mxu0 0.0
        %228 = vmatpush.msra.mxu0 0.0
        %229 = vmatpush.msra.mxu0 0.0
        %230 = vmatpush.msra.mxu0 %v209
        %231 = vmatpush.msra.mxu0 %v208
        %232 = vmatpush.msra.mxu0 %v207
        %233 = vmatpush.msra.mxu0 %v206
        %234 = vmatmul.f32.gmra.mxu0 %v216
        %v235 = vpop.f32.mrf.mxu0
        %v236 = vadd.f32 %v212, %v235
        %237 = vdwg.mxu0
        %v238 = vmul.f32 %v236, 0.35355338
        %v239 = vlaneseq
        %v240 = vshrl.u32 %v239, 7
        %v241 = vlaneseq
        %v242 = vand.u32 %v241, 127
        %vm243 = vcmp.le.s32.totalorder %v242, %v240
        %vm244 = vcmp.ge.s32.totalorder %v242, 0
        %vm245 = vcmp.lt.s32.totalorder %v242, 8
        %vm246 = vmand %vm244, %vm245
        %v247 = vsel %vm246, %v238, 0.0
        %249 = vrot.lane.b32.xlu0 %v236, 64
        %v250 = vpop.permute.xlu0 %249
        %v252 = vsel %vm246, %v250, 0.0
        %253 = vrot.lane.b32.xlu0 %v236, 96
        %v254 = vpop.permute.xlu0 %253
        %v256 = vsel %vm214, %v247, 0
        %v258 = vsel %vm214, %v254, 0
        %260 = vmatpush.xpose.msra.mxu0 0.0
        %261 = vmatpush.xpose.msra.mxu0 0.0
        %262 = vmatpush.xpose.msra.mxu0 0.0
        %263 = vmatpush.xpose.msra.mxu0 0.0
        %264 = vmatpush.xpose.msra.mxu0 0.0
        %265 = vmatpush.xpose.msra.mxu0 0.0
        %266 = vmatpush.xpose.msra.mxu0 0.0
        %267 = vmatpush.xpose.msra.mxu0 0.0
        %268 = vmatpush.xpose.msra.mxu0 0.0
        %269 = vmatpush.xpose.msra.mxu0 0.0
        %270 = vmatpush.xpose.msra.mxu0 0.0
        %271 = vmatpush.xpose.msra.mxu0 0.0
        %272 = vmatpush.xpose.msra.mxu0 0.0
        %273 = vmatpush.xpose.msra.mxu0 0.0
        %274 = vmatpush.xpose.msra.mxu0 0.0
        %275 = vmatpush.xpose.msra.mxu0 %v258
        %276 = vmatmul.f32.gmra.mxu0 %v256
        %v277 = vpop.f32.mrf.mxu0
        %v278 = vadd.f32 0.0, %v277
        %279 = vdwg.mxu0
        %v280 = vsel %vm243, %v278, -1e+30
        %vm281 = vcmask 64512
        %v282 = vsel %vm281, %v280, -inf
        %283 = vmax.xlane.f32.xlu0 %v282
        %v284 = vpop.xlane.xlu0 %283
        %v285 = vsub.f32 %v280, %v284
        %v286 = vmul.f32 %v285, 1.442695
        %v287 = vpow.pop %v286
        %v288 = vsel %vm281, %v287, 0.0
        %289 = vadd.xlane.f32.xlu0 %v288
        %v290 = vpop.xlane.xlu0 %289
        %v291 = vrcp.pop %v290
        %v292 = vmul.f32 %v290, %v291
        %v293 = vsub.f32 1.0, %v292
        %v294 = vmul.f32 %v291, %v293
        %v295 = vadd.f32 %v291, %v294
        %vm296 = vweird.f32 %v290
        %vm297 = vweird.f32 %v291
        %vm298 = vmor %vm296, %vm297
        %v299 = vsel %vm298, %v291, %v295
        %v300 = vand.u32 2147483647, %v290
        %vm301 = vcmp.eq.f32.partialorder %v300, 8.507059e+37
        %v302 = vand.u32 %v290, 2147483648
        %v303 = vor.u32 1.1754944e-38, %v302
        %v304 = vsel %vm301, %v303, %v299
        %v305 = vmul.f32 1.0, %v304
        %v306 = vmul.f32 %v287, %v305
        %vm307 = vcmp.ge.s32.totalorder %v242, 8
        %vm308 = vcmp.lt.s32.totalorder %v242, 16
        %vm309 = vmand %vm307, %vm308
        %v310 = vsel %vm309, %v238, 0.0
        %v311 = vsel %vm309, %v250, 0.0
        %v313 = vsel %vm214, %v310, 0
        %315 = vmatpush.xpose.msra.mxu0 0.0
        %316 = vmatpush.xpose.msra.mxu0 0.0
        %317 = vmatpush.xpose.msra.mxu0 0.0
        %318 = vmatpush.xpose.msra.mxu0 0.0
        %319 = vmatpush.xpose.msra.mxu0 0.0
        %320 = vmatpush.xpose.msra.mxu0 0.0
        %321 = vmatpush.xpose.msra.mxu0 0.0
        %322 = vmatpush.xpose.msra.mxu0 0.0
        %323 = vmatpush.xpose.msra.mxu0 0.0
        %324 = vmatpush.xpose.msra.mxu0 0.0
        %325 = vmatpush.xpose.msra.mxu0 0.0
        %326 = vmatpush.xpose.msra.mxu0 0.0
        %327 = vmatpush.xpose.msra.mxu0 0.0
        %328 = vmatpush.xpose.msra.mxu0 0.0
        %329 = vmatpush.xpose.msra.mxu0 0.0
        %330 = vmatpush.xpose.msra.mxu0 %v258
        %331 = vmatmul.f32.gmra.mxu0 %v313
        %v332 = vpop.f32.mrf.mxu0
        %v333 = vadd.f32 0.0, %v332
        %334 = vdwg.mxu0
        %v335 = vsel %vm243, %v333, -1e+30
        %v336 = vsel %vm281, %v335, -inf
        %337 = vmax.xlane.f32.xlu0 %v336
        %v338 = vpop.xlane.xlu0 %337
        %v339 = vsub.f32 %v335, %v338
        %v340 = vmul.f32 %v339, 1.442695
        %v341 = vpow.pop %v340
        %v342 = vsel %vm281, %v341, 0.0
        %343 = vadd.xlane.f32.xlu0 %v342
        %v344 = vpop.xlane.xlu0 %343
        %v345 = vrcp.pop %v344
        %v346 = vmul.f32 %v344, %v345
        %v347 = vsub.f32 1.0, %v346
        %v348 = vmul.f32 %v345, %v347
        %v349 = vadd.f32 %v345, %v348
        %vm350 = vweird.f32 %v344
        %vm351 = vweird.f32 %v345
        %vm352 = vmor %vm350, %vm351
        %v353 = vsel %vm352, %v345, %v349
        %v354 = vand.u32 2147483647, %v344
        %vm355 = vcmp.eq.f32.partialorder %v354, 8.507059e+37
        %v356 = vand.u32 %v344, 2147483648
        %v357 = vor.u32 1.1754944e-38, %v356
        %v358 = vsel %vm355, %v357, %v353
        %v359 = vmul.f32 1.0, %v358
        %v360 = vmul.f32 %v341, %v359
        %v362 = vsel %vm281, %v360, 0
        %364 = vmatpush.msra.mxu0 0.0
        %365 = vmatpush.msra.mxu0 0.0
        %366 = vmatpush.msra.mxu0 0.0
        %367 = vmatpush.msra.mxu0 0.0
        %368 = vmatpush.msra.mxu0 0.0
        %369 = vmatpush.msra.mxu0 0.0
        %370 = vmatpush.msra.mxu0 0.0
        %371 = vmatpush.msra.mxu0 0.0
        %372 = vmatpush.msra.mxu0 0.0
        %373 = vmatpush.msra.mxu0 0.0
        %374 = vmatpush.msra.mxu0 0.0
        %375 = vmatpush.msra.mxu0 0.0
        %376 = vmatpush.msra.mxu0 0.0
        %377 = vmatpush.msra.mxu0 0.0
        %378 = vmatpush.msra.mxu0 0.0
        %379 = vmatpush.msra.mxu0 %v311
        %380 = vmatmul.f32.gmra.mxu0 %v362
        %v381 = vpop.f32.mrf.mxu0
        %v382 = vadd.f32 0.0, %v381
        %383 = vdwg.mxu0
        %v385 = vsel %vm281, %v306, 0
        %387 = vmatpush.msra.mxu0 0.0
        %388 = vmatpush.msra.mxu0 0.0
        %389 = vmatpush.msra.mxu0 0.0
        %390 = vmatpush.msra.mxu0 0.0
        %391 = vmatpush.msra.mxu0 0.0
        %392 = vmatpush.msra.mxu0 0.0
        %393 = vmatpush.msra.mxu0 0.0
        %394 = vmatpush.msra.mxu0 0.0
        %395 = vmatpush.msra.mxu0 0.0
        %396 = vmatpush.msra.mxu0 0.0
        %397 = vmatpush.msra.mxu0 0.0
        %398 = vmatpush.msra.mxu0 0.0
        %399 = vmatpush.msra.mxu0 0.0
        %400 = vmatpush.msra.mxu0 0.0
        %401 = vmatpush.msra.mxu0 0.0
        %402 = vmatpush.msra.mxu0 %v252
        %403 = vmatmul.f32.gmra.mxu0 %v385
        %v404 = vpop.f32.mrf.mxu0
        %v405 = vadd.f32 %v382, %v404
        %406 = vdwg.mxu0
        %vm407 = vcmp.ge.s32.totalorder %v242, 16
        %vm408 = vcmp.lt.s32.totalorder %v242, 24
        %vm409 = vmand %vm407, %vm408
        %v410 = vsel %vm409, %v238, 0.0
        %v411 = vsel %vm409, %v250, 0.0
        %v413 = vsel %vm214, %v410, 0
        %415 = vmatpush.xpose.msra.mxu0 0.0
        %416 = vmatpush.xpose.msra.mxu0 0.0
        %417 = vmatpush.xpose.msra.mxu0 0.0
        %418 = vmatpush.xpose.msra.mxu0 0.0
        %419 = vmatpush.xpose.msra.mxu0 0.0
        %420 = vmatpush.xpose.msra.mxu0 0.0
        %421 = vmatpush.xpose.msra.mxu0 0.0
        %422 = vmatpush.xpose.msra.mxu0 0.0
        %423 = vmatpush.xpose.msra.mxu0 0.0
        %424 = vmatpush.xpose.msra.mxu0 0.0
        %425 = vmatpush.xpose.msra.mxu0 0.0
        %426 = vmatpush.xpose.msra.mxu0 0.0
        %427 = vmatpush.xpose.msra.mxu0 0.0
        %428 = vmatpush.xpose.msra.mxu0 0.0
        %429 = vmatpush.xpose.msra.mxu0 0.0
        %430 = vmatpush.xpose.msra.mxu0 %v258
        %431 = vmatmul.f32.gmra.mxu0 %v413
        %v432 = vpop.f32.mrf.mxu0
        %v433 = vadd.f32 0.0, %v432
        %434 = vdwg.mxu0
        %v435 = vsel %vm243, %v433, -1e+30
        %v436 = vsel %vm281, %v435, -inf
        %437 = vmax.xlane.f32.xlu0 %v436
        %v438 = vpop.xlane.xlu0 %437
        %v439 = vsub.f32 %v435, %v438
        %v440 = vmul.f32 %v439, 1.442695
        %v441 = vpow.pop %v440
        %v442 = vsel %vm281, %v441, 0.0
        %443 = vadd.xlane.f32.xlu0 %v442
        %v444 = vpop.xlane.xlu0 %443
        %v445 = vrcp.pop %v444
        %v446 = vmul.f32 %v444, %v445
        %v447 = vsub.f32 1.0, %v446
        %v448 = vmul.f32 %v445, %v447
        %v449 = vadd.f32 %v445, %v448
        %vm450 = vweird.f32 %v444
        %vm451 = vweird.f32 %v445
        %vm452 = vmor %vm450, %vm451
        %v453 = vsel %vm452, %v445, %v449
        %v454 = vand.u32 2147483647, %v444
        %vm455 = vcmp.eq.f32.partialorder %v454, 8.507059e+37
        %v456 = vand.u32 %v444, 2147483648
        %v457 = vor.u32 1.1754944e-38, %v456
        %v458 = vsel %vm455, %v457, %v453
        %v459 = vmul.f32 1.0, %v458
        %v460 = vmul.f32 %v441, %v459
        %v462 = vsel %vm281, %v460, 0
        %464 = vmatpush.msra.mxu0 0.0
        %465 = vmatpush.msra.mxu0 0.0
        %466 = vmatpush.msra.mxu0 0.0
        %467 = vmatpush.msra.mxu0 0.0
        %468 = vmatpush.msra.mxu0 0.0
        %469 = vmatpush.msra.mxu0 0.0
        %470 = vmatpush.msra.mxu0 0.0
        %471 = vmatpush.msra.mxu0 0.0
        %472 = vmatpush.msra.mxu0 0.0
        %473 = vmatpush.msra.mxu0 0.0
        %474 = vmatpush.msra.mxu0 0.0
        %475 = vmatpush.msra.mxu0 0.0
        %476 = vmatpush.msra.mxu0 0.0
        %477 = vmatpush.msra.mxu0 0.0
        %478 = vmatpush.msra.mxu0 0.0
        %479 = vmatpush.msra.mxu0 %v411
        %480 = vmatmul.f32.gmra.mxu0 %v462
        %v481 = vpop.f32.mrf.mxu0
        %v482 = vadd.f32 0.0, %v481
        %483 = vdwg.mxu0
        %v484 = vadd.f32 %v405, %v482
        %vm485 = vcmp.ge.s32.totalorder %v242, 24
        %vm486 = vcmp.lt.s32.totalorder %v242, 32
        %vm487 = vmand %vm485, %vm486
        %v488 = vsel %vm487, %v238, 0.0
        %v489 = vsel %vm487, %v250, 0.0
        %v491 = vsel %vm214, %v488, 0
        %493 = vmatpush.xpose.msra.mxu0 0.0
        %494 = vmatpush.xpose.msra.mxu0 0.0
        %495 = vmatpush.xpose.msra.mxu0 0.0
        %496 = vmatpush.xpose.msra.mxu0 0.0
        %497 = vmatpush.xpose.msra.mxu0 0.0
        %498 = vmatpush.xpose.msra.mxu0 0.0
        %499 = vmatpush.xpose.msra.mxu0 0.0
        %500 = vmatpush.xpose.msra.mxu0 0.0
        %501 = vmatpush.xpose.msra.mxu0 0.0
        %502 = vmatpush.xpose.msra.mxu0 0.0
        %503 = vmatpush.xpose.msra.mxu0 0.0
        %504 = vmatpush.xpose.msra.mxu0 0.0
        %505 = vmatpush.xpose.msra.mxu0 0.0
        %506 = vmatpush.xpose.msra.mxu0 0.0
        %507 = vmatpush.xpose.msra.mxu0 0.0
        %508 = vmatpush.xpose.msra.mxu0 %v258
        %509 = vmatmul.f32.gmra.mxu0 %v491
        %v510 = vpop.f32.mrf.mxu0
        %v511 = vadd.f32 0.0, %v510
        %512 = vdwg.mxu0
        %v513 = vsel %vm243, %v511, -1e+30
        %v514 = vsel %vm281, %v513, -inf
        %515 = vmax.xlane.f32.xlu0 %v514
        %v516 = vpop.xlane.xlu0 %515
        %v517 = vsub.f32 %v513, %v516
        %v518 = vmul.f32 %v517, 1.442695
        %v519 = vpow.pop %v518
        %v520 = vsel %vm281, %v519, 0.0
        %521 = vadd.xlane.f32.xlu0 %v520
        %v522 = vpop.xlane.xlu0 %521
        %v523 = vrcp.pop %v522
        %v524 = vmul.f32 %v522, %v523
        %v525 = vsub.f32 1.0, %v524
        %v526 = vmul.f32 %v523, %v525
        %v527 = vadd.f32 %v523, %v526
        %vm528 = vweird.f32 %v522
        %vm529 = vweird.f32 %v523
        %vm530 = vmor %vm528, %vm529
        %v531 = vsel %vm530, %v523, %v527
        %v532 = vand.u32 2147483647, %v522
        %vm533 = vcmp.eq.f32.partialorder %v532, 8.507059e+37
        %v534 = vand.u32 %v522, 2147483648
        %v535 = vor.u32 1.1754944e-38, %v534
        %v536 = vsel %vm533, %v535, %v531
        %v537 = vmul.f32 1.0, %v536
        %v538 = vmul.f32 %v519, %v537
        %v540 = vsel %vm281, %v538, 0
        %542 = vmatpush.msra.mxu0 0.0
        %543 = vmatpush.msra.mxu0 0.0
        %544 = vmatpush.msra.mxu0 0.0
        %545 = vmatpush.msra.mxu0 0.0
        %546 = vmatpush.msra.mxu0 0.0
        %547 = vmatpush.msra.mxu0 0.0
        %548 = vmatpush.msra.mxu0 0.0
        %549 = vmatpush.msra.mxu0 0.0
        %550 = vmatpush.msra.mxu0 0.0
        %551 = vmatpush.msra.mxu0 0.0
        %552 = vmatpush.msra.mxu0 0.0
        %553 = vmatpush.msra.mxu0 0.0
        %554 = vmatpush.msra.mxu0 0.0
        %555 = vmatpush.msra.mxu0 0.0
        %556 = vmatpush.msra.mxu0 0.0
        %557 = vmatpush.msra.mxu0 %v489
        %558 = vmatmul.f32.gmra.mxu0 %v540
        %v559 = vpop.f32.mrf.mxu0
        %v560 = vadd.f32 0.0, %v559
        %561 = vdwg.mxu0
        %v562 = vadd.f32 %v484, %v560
        %563 = vst.msk [vmem:[%s204] sm:$0xff] %vm214, %v562
        %s564 = sand.u32 %s97, 1
        %s565 = scalar_lea.sflag [#allocation4], %s564
        %s566 = sand.u32 %s97, 1
        %s567 = smul.addr %s566, 8
        %s568 = scalar_lea.vmem [#allocation7], %s567
        // Predicated region
        $region41: #{multi_head_attention.1} parent=31 // pred_check
          %p569 = pneg %p107
        $region42: #{multi_head_attention.1} parent=31 // pred_check_branch
          %571 = sbr.rel (%p569) target = $region44
        $region43: #{multi_head_attention.1} parent=31 // pred_region
          %573 = vsyncadd %s565, 0
          %s574 = smul.addr %s21, 8
          %s575 = scalar_lea.hbm %s3, %s574
          %s577 = sshll.u32 %s568, 4
          %s578 = int_to_ptr.vmem [resolvable:$true] %s577
          %s579 = sshll.u32 %s575, 4
          %s580 = int_to_ptr.hbm [resolvable:$true] %s579
          %582 = dma.vmem_to_hbm [thread:$0]  %s578, 128, %s580, %s565
        $region44: #{multi_head_attention.1} parent=31 // pred_fallthru
          _
      $region32: #{multi_head_attention.1} parent=5 // pred_fallthru
        _
      %p583 = scmp.le.s32.totalorder 2, %s16
      // Predicated region
      $region45: #{multi_head_attention.1} parent=5 // pred_check
        %p584 = pneg %p583
      $region46: #{multi_head_attention.1} parent=5 // pred_check_branch
        %586 = sbr.rel (%p584) target = $region48
      $region47: #{multi_head_attention.1} parent=5 // pred_region
        %s587 = ssub.s32 %s16, 2
        // Predicated region
        $region49: #{multi_head_attention.1} parent=47 // pred_check
          %p588 = pneg %p113
        $region50: #{multi_head_attention.1} parent=47 // pred_check_branch
          %590 = sbr.rel (%p588) target = $region52
        $region51: #{multi_head_attention.1} parent=47 // pred_region
          %s591 = sand.u32 %s98, 1
          %s592 = scalar_lea.sflag [#allocation4], %s591
          %s593 = sand.u32 %s98, 1
          %s594 = smul.addr %s593, 8
          %s595 = scalar_lea.vmem [#allocation7], %s594
          %597 = dma.done %s592, 128
        $region52: #{multi_head_attention.1} parent=47 // pred_fallthru
          _
      $region48: #{multi_head_attention.1} parent=5 // pred_fallthru
        _
    $region6: #{multi_head_attention.1} parent=1 // loop_footer
      %s20 = sadd.s32 1, %s16
    $region7: #{multi_head_attention.1} parent=1 // loop_footer_branch
      %15 = sbr.rel target = $region3
    $region8: #{multi_head_attention.1} parent=1 // loop_exit
      _
    %598 = vsyncpa [#allocation3], 1
    %s599 = scalar_lea.sflag [#allocation3], 1
    %600 = vsyncpa %s599, 1
    %601 = vsyncpa [#allocation6], 1
    %602 = vsyncpa [#allocation4], 1
    %s603 = scalar_lea.sflag [#allocation4], 1
    %604 = vsyncpa %s603, 1

</llo_original>
